<compile_context>
chip_gen: v5e
topology: v5e:2x2
jax: 0.10.0
libtpu: 0.0.40
codegen_flags: <defaults>
</compile_context>

<pallas_src>
import functools

import jax
import jax.numpy as jnp
from jax.experimental import pallas as pl
from jax.experimental.pallas import tpu as pltpu

AGENT_STATE_LEN = 73
NUM_CHAR, CHAR_DIM = 100, 16
NUM_ROLE, ROLE_DIM = 8, 8
NUM_BUFF, BUFF_DIM = 50, 6
STATE_DIM = AGENT_STATE_LEN - 3                        # 70
FEAT_DIM = CHAR_DIM + ROLE_DIM + BUFF_DIM + STATE_DIM  # 100
CAT_DIM = NUM_CHAR + NUM_ROLE + NUM_BUFF               # 158 (stacked one-hot)
TOTAL_K = AGENT_STATE_LEN + CAT_DIM                    # 231 (x | one-hot)
OUT_DIM = 128


def agent_state_kernel(x_ref, w_ref, o_ref):
    """One batch tile: relu(concat([x, onehot]) @ fused_weight)."""
    x = x_ref[...]                                      # [bm, 73] float32
    bm = x.shape[0]

    # Stacked [bm, 158] one-hot covering all three categorical ids at column
    # offsets 0 / 100 / 108.  Build per-lane target id with two selects over
    # loop-invariant region masks, then a single equality.
    idx_c = x[:, 0:1].astype(jnp.int32)                           # [bm, 1]
    idx_r = x[:, 1:2].astype(jnp.int32) + NUM_CHAR
    idx_b = x[:, 2:3].astype(jnp.int32) + (NUM_CHAR + NUM_ROLE)
    iota = jax.lax.broadcasted_iota(jnp.int32, (bm, CAT_DIM), 1)
    target = jnp.where(iota < NUM_CHAR, idx_c,
                       jnp.where(iota < NUM_CHAR + NUM_ROLE, idx_r, idx_b))
    onehot = (iota == target).astype(jnp.float32)                 # [bm, 158]

    # Single [bm, 231] operand: raw x (id columns hit zeroed weight rows)
    # followed by the stacked one-hot.  One MXU matmul, f32 accumulation.
    combined = jnp.concatenate([x, onehot], axis=-1).astype(w_ref.dtype)
    acc = jnp.dot(combined, w_ref[...], preferred_element_type=jnp.float32)
    o_ref[...] = jnp.maximum(acc, 0.0)                            # ReLU


def _round_up(n, m):
    return ((n + m - 1) // m) * m


_TC_PER_CHIP = None


def _tensorcore_count():
    """2 TensorCores per chip on v7x, 1 on v5e/v6e (best-effort detection)."""
    global _TC_PER_CHIP
    if _TC_PER_CHIP is None:
        try:
            kind = jax.devices()[0].device_kind.lower()
            _TC_PER_CHIP = 2 if "v7" in kind else 1
        except Exception:  # pragma: no cover - defensive
            _TC_PER_CHIP = 1
    return _TC_PER_CHIP


def _choose_bm(B, block_b):
    block_b = max(8, (block_b // 8) * 8)
    b8 = _round_up(max(B, 1), 8)
    if _tensorcore_count() <= 1:
        # v5e / v6e: single TensorCore -> one big block unless B > block_b.
        return max(8, min(block_b, b8))
    # v7x megacore: once there is enough work, aim for >= 4 grid steps
    # (>= 2 per core) so each core's tile DMA overlaps its compute.
    if b8 <= 4 * 8:
        return max(8, min(block_b, b8))
    return max(8, min(block_b, _round_up(pl.cdiv(b8, 4), 8)))


@functools.partial(jax.jit, static_argnames=("block_b", "use_bf16"))
def agent_state_forward(x, char_tbl, role_tbl, buff_tbl, w, b,
                        *, block_b=2048, use_bf16=False):
    B = x.shape[0]

    # Split the linear weight by concat groups [char | role | buff | states],
    # fuse each embedding table with its slice, fold the bias into the char
    # section, and zero the rows hit by the 3 raw id columns of x.
    wc = w[0:CHAR_DIM]
    wr = w[CHAR_DIM:CHAR_DIM + ROLE_DIM]
    wb = w[CHAR_DIM + ROLE_DIM:CHAR_DIM + ROLE_DIM + BUFF_DIM]
    ws = w[CHAR_DIM + ROLE_DIM + BUFF_DIM:]                       # [70, 128]
    fused = jnp.concatenate([
        jnp.zeros((3, OUT_DIM), w.dtype),                         # id columns
        ws,                                                       # [70, 128]
        char_tbl @ wc + b[None, :],                               # [100, 128]
        role_tbl @ wr,                                            # [8, 128]
        buff_tbl @ wb,                                            # [50, 128]
    ], axis=0)                                                    # [231, 128]
    if use_bf16:
        fused = fused.astype(jnp.bfloat16)

    bm = _choose_bm(B, block_b)
    grid_spec = pltpu.PrefetchScalarGridSpec(
        num_scalar_prefetch=0,
        grid=(pl.cdiv(B, bm),),
        in_specs=[
            pl.BlockSpec((bm, AGENT_STATE_LEN), lambda i: (i, 0)),
            pl.BlockSpec((TOTAL_K, OUT_DIM), lambda i: (0, 0)),   # resident
        ],
        out_specs=pl.BlockSpec((bm, OUT_DIM), lambda i: (i, 0)),
    )
    return pl.pallas_call(
        agent_state_kernel,
        out_shape=jax.ShapeDtypeStruct((B, OUT_DIM), jnp.float32),
        grid_spec=grid_spec,
        compiler_params=pltpu.CompilerParams(
            dimension_semantics=("parallel",)),
    )(x, fused)


def reference_forward(x, char_tbl, role_tbl, buff_tbl, w, b):
    ec = char_tbl[x[:, 0].astype(jnp.int32)]
    er = role_tbl[x[:, 1].astype(jnp.int32)]
    eb = buff_tbl[x[:, 2].astype(jnp.int32)]
    feat = jnp.concatenate([ec, er, eb, x[:, 3:]], axis=1)
    return jnp.maximum(feat @ w + b, 0.0)


def _make_inputs(key, B):
    k_ids, k_states, k_ct, k_rt, k_bt, k_w, k_b = jax.random.split(key, 7)
    ids = jnp.stack([
        jax.random.randint(k_ids, (B,), 0, NUM_CHAR),
        jax.random.randint(jax.random.fold_in(k_ids, 1), (B,), 0, NUM_ROLE),
        jax.random.randint(jax.random.fold_in(k_ids, 2), (B,), 0, NUM_BUFF),
    ], axis=1).astype(jnp.float32)
    states = jax.random.normal(k_states, (B, STATE_DIM), dtype=jnp.float32)
    x = jnp.concatenate([ids, states], axis=1)                    # [B, 73]

    char_tbl = jax.random.normal(k_ct, (NUM_CHAR, CHAR_DIM), jnp.float32)
    role_tbl = jax.random.normal(k_rt, (NUM_ROLE, ROLE_DIM), jnp.float32)
    buff_tbl = jax.random.normal(k_bt, (NUM_BUFF, BUFF_DIM), jnp.float32)
    w = jax.random.normal(k_w, (FEAT_DIM, OUT_DIM), jnp.float32) * (1.0 / FEAT_DIM ** 0.5)
    b = jax.random.normal(k_b, (OUT_DIM,), jnp.float32) * 0.01
    return x, char_tbl, role_tbl, buff_tbl, w, b


if __name__ == "__main__":
    key = jax.random.PRNGKey(0)

    # B=8: single full block.
    x, ct, rt, bt, w, b = _make_inputs(key, B=8)
    out = jax.block_until_ready(agent_state_forward(x, ct, rt, bt, w, b))
    ref = reference_forward(x, ct, rt, bt, w, b)
    assert out.shape == (8, OUT_DIM)
    assert jnp.allclose(out, ref, atol=1e-4, rtol=1e-4), "mismatch (B=8)"

    # B=19: ragged batch, relies on Pallas masking of the partial last block
    # (no host-side pad/slice anymore).
    x2, ct2, rt2, bt2, w2, b2 = _make_inputs(jax.random.PRNGKey(1), B=19)
    out2 = jax.block_until_ready(agent_state_forward(x2, ct2, rt2, bt2, w2, b2))
    ref2 = reference_forward(x2, ct2, rt2, bt2, w2, b2)
    assert out2.shape == (19, OUT_DIM)
    assert jnp.allclose(out2, ref2, atol=1e-4, rtol=1e-4), "mismatch (B=19)"

    # Same ragged batch, forced multi-step grid with a partial last block.
    out3 = jax.block_until_ready(
        agent_state_forward(x2, ct2, rt2, bt2, w2, b2, block_b=8))
    assert jnp.allclose(out3, ref2, atol=1e-4, rtol=1e-4), "mismatch (B=19, bm=8)"

    # Optional bf16-operand fast path (numerics-relaxed check, off by default).
    out4 = jax.block_until_ready(
        agent_state_forward(x2, ct2, rt2, bt2, w2, b2, use_bf16=True))
    assert jnp.allclose(out4, ref2, atol=2e-1, rtol=1e-1), "mismatch (bf16)"

    print("KERNEL_OK")
</pallas_src>

<mosaic_0001>
module attributes {stable_mosaic.version = 11 : i64} {
  func.func @agent_state_kernel(%arg0: i32, %arg1: memref<8x73xf32, #tpu.memory_space<vmem>>, %arg2: memref<231x128xf32, #tpu.memory_space<vmem>>, %arg3: memref<8x128xf32, #tpu.memory_space<vmem>>) attributes {dimension_semantics = [#tpu.dimension_semantics<parallel>], iteration_bounds = array<i64: 1>, scalar_prefetch = 0 : i64, scratch_operands = 0 : i64, tpu.core_type = #tpu.core_type<tc>, window_params = [{transform_indices = @transform_0, window_bounds = array<i64: 8, 73>}, {pipeline_mode = #tpu.pipeline_mode<synchronous>, transform_indices = @transform_1, window_bounds = array<i64: 231, 128>}, {transform_indices = @transform_2, window_bounds = array<i64: 8, 128>}]} {
    %c0 = arith.constant 0 : index
    %c0_0 = arith.constant 0 : index
    %0 = vector.load %arg1[%c0, %c0_0] : memref<8x73xf32, #tpu.memory_space<vmem>>, vector<8x73xf32>
    %1 = vector.extract_strided_slice %0 {offsets = [0, 0], sizes = [8, 1], strides = [1, 1]} : vector<8x73xf32> to vector<8x1xf32>
    %2 = arith.fptosi %1 : vector<8x1xf32> to vector<8x1xi32>
    %3 = vector.extract_strided_slice %0 {offsets = [0, 1], sizes = [8, 1], strides = [1, 1]} : vector<8x73xf32> to vector<8x1xf32>
    %4 = arith.fptosi %3 : vector<8x1xf32> to vector<8x1xi32>
    %c100_i32 = arith.constant 100 : i32
    %5 = vector.broadcast %c100_i32 : i32 to vector<8x1xi32>
    %6 = arith.addi %4, %5 : vector<8x1xi32>
    %7 = vector.extract_strided_slice %0 {offsets = [0, 2], sizes = [8, 1], strides = [1, 1]} : vector<8x73xf32> to vector<8x1xf32>
    %8 = arith.fptosi %7 : vector<8x1xf32> to vector<8x1xi32>
    %c108_i32 = arith.constant 108 : i32
    %9 = vector.broadcast %c108_i32 : i32 to vector<8x1xi32>
    %10 = arith.addi %8, %9 : vector<8x1xi32>
    %11 = tpu.iota {dimensions = array<i32: 1>} : vector<8x158xi32>
    %c100_i32_1 = arith.constant 100 : i32
    %12 = vector.broadcast %c100_i32_1 : i32 to vector<8x158xi32>
    %13 = arith.cmpi slt, %11, %12 : vector<8x158xi32>
    %c108_i32_2 = arith.constant 108 : i32
    %14 = vector.broadcast %c108_i32_2 : i32 to vector<8x158xi32>
    %15 = arith.cmpi slt, %11, %14 : vector<8x158xi32>
    %16 = vector.shape_cast %6 : vector<8x1xi32> to vector<8x1xi32>
    %17 = vector.broadcast %16 : vector<8x1xi32> to vector<8x158xi32>
    %18 = vector.shape_cast %10 : vector<8x1xi32> to vector<8x1xi32>
    %19 = vector.broadcast %18 : vector<8x1xi32> to vector<8x158xi32>
    %20 = arith.select %15, %17, %19 : vector<8x158xi1>, vector<8x158xi32>
    %21 = vector.shape_cast %2 : vector<8x1xi32> to vector<8x1xi32>
    %22 = vector.broadcast %21 : vector<8x1xi32> to vector<8x158xi32>
    %23 = arith.select %13, %22, %20 : vector<8x158xi1>, vector<8x158xi32>
    %24 = arith.cmpi eq, %11, %23 : vector<8x158xi32>
    %25 = arith.extui %24 : vector<8x158xi1> to vector<8x158xi32>
    %26 = arith.sitofp %25 : vector<8x158xi32> to vector<8x158xf32>
    %27 = tpu.concatenate %0, %26 in 1 : vector<8x73xf32>, vector<8x158xf32> -> vector<8x231xf32>
    %c0_3 = arith.constant 0 : index
    %c0_4 = arith.constant 0 : index
    %28 = vector.load %arg2[%c0_3, %c0_4] : memref<231x128xf32, #tpu.memory_space<vmem>>, vector<231x128xf32>
    %cst = arith.constant dense<0.000000e+00> : vector<8x128xf32>
    %29 = tpu.matmul %27, %28, %cst {dimension_numbers = #tpu.dot_dimension_numbers<[1], [0], [0], [1], [0, 0, 1, 1], [], []>} : vector<8x231xf32>, vector<231x128xf32>, vector<8x128xf32> -> vector<8x128xf32>
    %cst_5 = arith.constant 0.000000e+00 : f32
    %30 = vector.broadcast %cst_5 : f32 to vector<8x128xf32>
    %31 = arith.maximumf %29, %30 : vector<8x128xf32>
    %c0_6 = arith.constant 0 : index
    %c0_7 = arith.constant 0 : index
    %32 = vector.load %arg3[%c0_6, %c0_7] : memref<8x128xf32, #tpu.memory_space<vmem>>, vector<8x128xf32>
    tpu.vector_store %arg3[%c0_6, %c0_7], %31 {strides = array<i32>} : memref<8x128xf32, #tpu.memory_space<vmem>>, vector<8x128xf32>,
    return
  }
  func.func @transform_0(%arg0: i32) -> (i32, i32) {
    %c0_i32 = arith.constant 0 : i32
    %c0_i32_0 = arith.constant 0 : i32
    return %arg0, %c0_i32 : i32, i32
  }
  func.func @transform_1(%arg0: i32) -> (i32, i32) {
    %c0_i32 = arith.constant 0 : i32
    %c0_i32_0 = arith.constant 0 : i32
    %c0_i32_1 = arith.constant 0 : i32
    return %c0_i32, %c0_i32_0 : i32, i32
  }
  func.func @transform_2(%arg0: i32) -> (i32, i32) {
    %c0_i32 = arith.constant 0 : i32
    %c0_i32_0 = arith.constant 0 : i32
    return %arg0, %c0_i32 : i32, i32
  }
}

</mosaic_0001>

<llo_original>
// kernel: agent_state_forward.1
$region0: #{agent_state_forward.1}
  #allocation0 [shape = 'u32[]', space=smem, size = 0x4, offset = 0x4, fixed_abs, tag = 'smem constant byte address 0x4 - core index']
  #allocation1 [shape = 'u32[72,128]{1,0:T(1,128)}', space=vmem, size = 0x9000, scoped, tag = 'internal scratch']
  %s0 = inlined_call_operand.vmem [shape: f32[8,73], index: 0, kind: input, shape index: {}]
  %s1 = inlined_call_operand.vmem [shape: f32[231,128], index: 1, kind: input, shape index: {}]
  %s2 = inlined_call_operand.hbm [shape: f32[8,128], index: 2, kind: output, shape index: {}]
  %s3 = sld [smem:[#allocation0]]
  $region18: #{agent_state_forward.1} parent=0
    _
  %s5 = ssub.s32 1, %s3
  %s6 = scalar_select 0, %s5, %s3
  $region1: #{agent_state_forward.1} parent=0
    #allocation2 [shape = 'u8[4096]{0}', space=vmem, size = 0x1000, scoped, tag = 'output window, operand 0, single buffered']
    #allocation3 [shape = 's32[1]{0}', space=sflag, size = 0x4, scoped, tag = 'scoped memory for agent_state_forward.1']
    %7 = vsyncpa [#allocation3], 0
    // Predicated region
    $region2: #{agent_state_forward.1} parent=1 // pred_check
      _
    $region3: #{agent_state_forward.1} parent=1 // pred_check_branch
      %9 = sbr.rel (0) target = $region5
    $region4: #{agent_state_forward.1} parent=1 // pred_region
      _
    $region5: #{agent_state_forward.1} parent=1 // pred_fallthru
      _
    // Predicated region
    $region6: #{agent_state_forward.1} parent=1 // pred_check
      _
    $region7: #{agent_state_forward.1} parent=1 // pred_check_branch
      %11 = sbr.rel (0) target = $region9
    $region8: #{agent_state_forward.1} parent=1 // pred_region
      _
    $region9: #{agent_state_forward.1} parent=1 // pred_fallthru
      _
    %v12 = vld [vmem:[%s0] sm:$0xff]
    %v13 = vcvt.f32.s32.to.zero.pseudo %v12
    %v14 = vadd.s32 %v13, 100
    %v15 = vadd.s32 %v13, 108
    %v16 = vlaneseq
    %v17 = vand.u32 %v16, 127
    %v18 = vadd.s32 %v17, 128
    %vm19 = vcmp.lt.s32.totalorder %v17, 100
    %vm20 = vcmp.lt.s32.totalorder %v18, 100
    %vm21 = vcmp.lt.s32.totalorder %v17, 108
    %vm22 = vcmp.lt.s32.totalorder %v18, 108
    %23 = vset.pattern.permute.xlu0 1
    %24 = vperm.xlu0 %23, %v14
    %v25 = vpop.permute.xlu0 %24
    %26 = vset.pattern.permute.xlu0 2
    %27 = vperm.xlu0 %26, %v15
    %v28 = vpop.permute.xlu0 %27
    %v29 = vsel %vm21, %v25, %v28
    %v30 = vsel %vm22, %v25, %v28
    %31 = vset.pattern.permute.xlu0 0
    %32 = vperm.xlu0 %31, %v13
    %v33 = vpop.permute.xlu0 %32
    %v34 = vsel %vm19, %v33, %v29
    %v35 = vsel %vm20, %v33, %v30
    %vm36 = vcmp.eq.s32.totalorder %v17, %v34
    %vm37 = vcmp.eq.s32.totalorder %v18, %v35
    %v38 = vsel %vm36, 1, 0
    %v39 = vsel %vm37, 1, 0
    %v40 = vcvt.s32.f32 %v38
    %v41 = vcvt.s32.f32 %v39
    %44 = vrot.lane.b32.xlu0 %v40, 73
    %v45 = vpop.permute.xlu0 %44
    %46 = vrot.lane.b32.xlu0 %v41, 73
    %v47 = vpop.permute.xlu0 %46
    %vm48 = vcmask 596992
    %v49 = vsel %vm48, %v45, %v47
    %v51 = vsel %vm48, %v12, %v45
    %v52 = vld [vmem:[%s1] sm:$0xff]
    %v53 = vld [vmem:[%s1 + $0x8] sm:$0xff]
    %v54 = vld [vmem:[%s1 + $0x10] sm:$0xff]
    %v55 = vld [vmem:[%s1 + $0x18] sm:$0xff]
    %v56 = vld [vmem:[%s1 + $0x20] sm:$0xff]
    %v57 = vld [vmem:[%s1 + $0x28] sm:$0xff]
    %v58 = vld [vmem:[%s1 + $0x30] sm:$0xff]
    %v59 = vld [vmem:[%s1 + $0x38] sm:$0xff]
    %v60 = vld [vmem:[%s1 + $0x40] sm:$0xff]
    %v61 = vld [vmem:[%s1 + $0x48] sm:$0xff]
    %v62 = vld [vmem:[%s1 + $0x50] sm:$0xff]
    %v63 = vld [vmem:[%s1 + $0x58] sm:$0xff]
    %v64 = vld [vmem:[%s1 + $0x60] sm:$0xff]
    %v65 = vld [vmem:[%s1 + $0x68] sm:$0xff]
    %v66 = vld [vmem:[%s1 + $0x70] sm:$0xff]
    %v67 = vld [vmem:[%s1 + $0x78] sm:$0xff]
    %v68 = vld [vmem:[%s1 + $0x80] sm:$0xff]
    %v69 = vld [vmem:[%s1 + $0x88] sm:$0xff]
    %v70 = vld [vmem:[%s1 + $0x90] sm:$0xff]
    %v71 = vld [vmem:[%s1 + $0x98] sm:$0xff]
    %v72 = vld [vmem:[%s1 + $0xa0] sm:$0xff]
    %v73 = vld [vmem:[%s1 + $0xa8] sm:$0xff]
    %v74 = vld [vmem:[%s1 + $0xb0] sm:$0xff]
    %v75 = vld [vmem:[%s1 + $0xb8] sm:$0xff]
    %v76 = vld [vmem:[%s1 + $0xc0] sm:$0xff]
    %v77 = vld [vmem:[%s1 + $0xc8] sm:$0xff]
    %v78 = vld [vmem:[%s1 + $0xd0] sm:$0xff]
    %v79 = vld [vmem:[%s1 + $0xd8] sm:$0xff]
    %v80 = vld [vmem:[%s1 + $0xe0] sm:$0x7f]
    %vm81 = vcmask 842752
    %v82 = vsel %vm81, %v49, 0
    %vm84 = vcmask 1046528
    %v86 = vsel %vm84, %v80, 0
    %88 = vmatpush.msra.mxu0 %v67
    %89 = vmatpush.msra.mxu0 %v66
    %90 = vmatpush.msra.mxu0 %v65
    %91 = vmatpush.msra.mxu0 %v64
    %92 = vmatpush.msra.mxu0 %v63
    %93 = vmatpush.msra.mxu0 %v62
    %94 = vmatpush.msra.mxu0 %v61
    %95 = vmatpush.msra.mxu0 %v60
    %96 = vmatpush.msra.mxu0 %v59
    %97 = vmatpush.msra.mxu0 %v58
    %98 = vmatpush.msra.mxu0 %v57
    %99 = vmatpush.msra.mxu0 %v56
    %100 = vmatpush.msra.mxu0 %v55
    %101 = vmatpush.msra.mxu0 %v54
    %102 = vmatpush.msra.mxu0 %v53
    %103 = vmatpush.msra.mxu0 %v52
    %104 = vmatmul.f32.gmra.mxu0 %v51
    %v105 = vpop.f32.mrf.mxu0
    %v106 = vadd.f32 0.0, %v105
    %107 = vdwg.mxu0
    %108 = vmatpush.msra.mxu0 0.0
    %109 = vmatpush.msra.mxu0 0.0
    %110 = vmatpush.msra.mxu0 0.0
    %111 = vmatpush.msra.mxu0 %v86
    %112 = vmatpush.msra.mxu0 %v79
    %113 = vmatpush.msra.mxu0 %v78
    %114 = vmatpush.msra.mxu0 %v77
    %115 = vmatpush.msra.mxu0 %v76
    %116 = vmatpush.msra.mxu0 %v75
    %117 = vmatpush.msra.mxu0 %v74
    %118 = vmatpush.msra.mxu0 %v73
    %119 = vmatpush.msra.mxu0 %v72
    %120 = vmatpush.msra.mxu0 %v71
    %121 = vmatpush.msra.mxu0 %v70
    %122 = vmatpush.msra.mxu0 %v69
    %123 = vmatpush.msra.mxu0 %v68
    %124 = vmatmul.f32.gmra.mxu0 %v82
    %v125 = vpop.f32.mrf.mxu0
    %v126 = vadd.f32 %v106, %v125
    %127 = vdwg.mxu0
    %v128 = vmax.f32 %v126, 0.0
    %129 = vst [vmem:[#allocation2] sm:$0xff] %v128
    // Predicated region
    $region10: #{agent_state_forward.1} parent=1 // pred_check
      _
    $region11: #{agent_state_forward.1} parent=1 // pred_check_branch
      %131 = sbr.rel (0) target = $region13
    $region12: #{agent_state_forward.1} parent=1 // pred_region
      %133 = vsyncadd [#allocation3], 0
      %s135 = sshll.u32 [#allocation2], 4
      %s136 = int_to_ptr.vmem [resolvable:$true] %s135
      %s137 = sshll.u32 %s2, 4
      %s138 = int_to_ptr.hbm [resolvable:$true] %s137
      %140 = dma.vmem_to_hbm [thread:$0]  %s136, 128, %s138, [#allocation3]
    $region13: #{agent_state_forward.1} parent=1 // pred_fallthru
      _
    // Predicated region
    $region14: #{agent_state_forward.1} parent=1 // pred_check
      _
    $region15: #{agent_state_forward.1} parent=1 // pred_check_branch
      %142 = sbr.rel (0) target = $region17
    $region16: #{agent_state_forward.1} parent=1 // pred_region
      %144 = dma.done [#allocation3], 128
    $region17: #{agent_state_forward.1} parent=1 // pred_fallthru
      _
    %145 = vsyncpa [#allocation3], 1

</llo_original>
